<compile_context>
chip_gen: v6e
topology: v6e:2x2x1
jax: 0.10.0
libtpu: 0.0.40
codegen_flags: <defaults>
</compile_context>

<pallas_src>
import jax
import jax.numpy as jnp
from jax.experimental import pallas as pl
from jax.experimental.pallas import tpu as pltpu


def _make_kernel(out_w: int, ts: int):
    n_chunks = max(1, ts // out_w)

    def kernel(p_ref, t_ref, m_ref, out_ref):
        p = p_ref[...].astype(jnp.float32)          # (tb, C, ts)
        t = t_ref[...].astype(jnp.float32)          # (tb, C, ts)
        m = m_ref[...].astype(jnp.float32)          # (tb, 1, ts)

        d = p - t
        w = (d * d) * (m * m)                       # mask broadcast over channel (sublane) dim

        # Reduce channels (sublane reduce), then batch-tile rows (elementwise vreg adds).
        s_c = jnp.sum(w, axis=1, keepdims=True)     # (tb, 1, ts)
        col = jnp.sum(s_c, axis=0, keepdims=True)   # (1, 1, ts)

        # Fold lanes down to a lane-dense 128-wide partial (static, aligned slices).
        part = col[:, :, 0:out_w]
        for k in range(1, n_chunks):
            part = part + col[:, :, k * out_w:(k + 1) * out_w]

        out_ref[...] = part.reshape(out_ref.shape)  # (1, 1, 1, out_w)

    return kernel


def _round_up(x, m):
    return ((x + m - 1) // m) * m


def _vmem_budget_bytes():
    """(double-buffered tile budget, vmem_limit_bytes) — safe on v5e/v6e/v7x."""
    # Conservative defaults that fit v7x (64 MiB physical VMEM per TensorCore).
    tiles_budget, vmem_limit = 24 * (1 << 20), 48 * (1 << 20)
    try:
        cap = getattr(pltpu.get_tpu_info(), "vmem_capacity_bytes", None)
        if cap is not None and int(cap) >= 96 * (1 << 20):   # v5e / v6e: 128 MiB VMEM
            tiles_budget, vmem_limit = 40 * (1 << 20), 80 * (1 << 20)
    except Exception:
        pass
    return tiles_budget, vmem_limit


def _pick_tiles(B, C, S, in_itemsize, m_itemsize, tiles_budget):
    """Padding-aware tile selection: (batch tile tb, spatial tile ts)."""
    LANE = 128
    # Spatial tile: a multiple-of-128 divisor of S (<= 2048 lanes), else full S.
    if S % LANE == 0 and S > 2048:
        ts = LANE
        t = LANE
        while t <= 2048:
            if S % t == 0:
                ts = t
            t += LANE
    else:
        ts = S

    ts_pad = _round_up(ts, LANE)
    in_pack = max(8, 32 // in_itemsize)     # sublane pack: 8 f32 / 16 bf16 / 32 int8
    m_pack = max(8, 32 // m_itemsize)
    c_pad = _round_up(C, in_pack)

    # Per-batch-row VMEM, double-buffered, padding-aware, mask buffers included.
    per_batch = 2 * (2 * c_pad * ts_pad * in_itemsize + m_pack * ts_pad * m_itemsize)
    tb = max(1, min(B, tiles_budget // max(per_batch, 1)))
    while B % tb:                            # keep the grid exact
        tb -= 1
    return tb, ts


def mask_mse_loss(pred, target, mask):
    """pred/target: (B, C, *spatial), mask: (B, *spatial). Returns scalar f32 loss."""
    B, C = pred.shape[0], pred.shape[1]
    S = 1
    for s in pred.shape[2:]:
        S *= s

    # Layout plumbing only (no dtype cast): spatial -> lane axis.
    pred3 = pred.reshape(B, C, S)
    target3 = target.reshape(B, C, S)
    mask3 = mask.reshape(B, 1, S)

    tiles_budget, vmem_limit = _vmem_budget_bytes()
    tb, ts = _pick_tiles(
        B, C, S,
        jnp.dtype(pred.dtype).itemsize,
        jnp.dtype(mask.dtype).itemsize,
        tiles_budget,
    )
    g0, g1 = B // tb, S // ts
    out_w = 128 if ts % 128 == 0 else ts

    partials = pl.pallas_call(
        _make_kernel(out_w, ts),
        out_shape=jax.ShapeDtypeStruct((g0, g1, 1, out_w), jnp.float32),
        grid_spec=pltpu.PrefetchScalarGridSpec(
            num_scalar_prefetch=0,
            grid=(g0, g1),
            in_specs=[
                pl.BlockSpec((tb, C, ts), lambda i, j: (i, 0, j)),
                pl.BlockSpec((tb, C, ts), lambda i, j: (i, 0, j)),
                pl.BlockSpec((tb, 1, ts), lambda i, j: (i, 0, j)),
            ],
            out_specs=pl.BlockSpec((1, 1, 1, out_w), lambda i, j: (i, j, 0, 0)),
        ),
        compiler_params=pltpu.CompilerParams(
            dimension_semantics=("parallel", "parallel"),
            vmem_limit_bytes=vmem_limit,
        ),
    )(pred3, target3, mask3)

    total = B * C * S
    # Tiny XLA finish: sum the lane-dense per-tile partials and take the mean.
    return jnp.sum(partials) * (1.0 / float(total))


def _reference(pred, target, mask):
    m = jnp.expand_dims(mask, 1)
    p = (pred * m).reshape(pred.shape[0], -1).astype(jnp.float32)
    t = (target * m).reshape(target.shape[0], -1).astype(jnp.float32)
    return jnp.mean((p - t) ** 2)


if __name__ == "__main__":
    B, C, H, W = 2, 4, 16, 16   # spatial 16x16 -> S = 256 (lane-dense, multiple of 128)

    key = jax.random.PRNGKey(0)
    k1, k2, k3 = jax.random.split(key, 3)
    pred = jax.random.normal(k1, (B, C, H, W), dtype=jnp.float32)
    target = jax.random.normal(k2, (B, C, H, W), dtype=jnp.float32)
    mask = (jax.random.uniform(k3, (B, H, W)) > 0.3).astype(jnp.float32)

    loss = jax.block_until_ready(mask_mse_loss(pred, target, mask))

    ref = _reference(pred, target, mask)
    assert jnp.allclose(loss, ref, atol=1e-6, rtol=1e-5), (loss, ref)

    print("KERNEL_OK")
</pallas_src>

<mosaic_0001>
module attributes {stable_mosaic.version = 11 : i64} {
  func.func @kernel(%arg0: i32, %arg1: i32, %arg2: memref<2x4x256xf32, #tpu.memory_space<vmem>>, %arg3: memref<2x4x256xf32, #tpu.memory_space<vmem>>, %arg4: memref<2x1x256xf32, #tpu.memory_space<vmem>>, %arg5: memref<1x1x1x128xf32, #tpu.memory_space<vmem>>) attributes {dimension_semantics = [#tpu.dimension_semantics<parallel>, #tpu.dimension_semantics<parallel>], iteration_bounds = array<i64: 1, 1>, scalar_prefetch = 0 : i64, scratch_operands = 0 : i64, tpu.core_type = #tpu.core_type<tc>, window_params = [{transform_indices = @transform_0, window_bounds = array<i64: 2, 4, 256>}, {transform_indices = @transform_1, window_bounds = array<i64: 2, 4, 256>}, {transform_indices = @transform_2, window_bounds = array<i64: 2, 1, 256>}, {transform_indices = @transform_3, window_bounds = array<i64: 1, 1, 1, 128>}]} {
    %c0 = arith.constant 0 : index
    %c0_0 = arith.constant 0 : index
    %c0_1 = arith.constant 0 : index
    %0 = vector.load %arg2[%c0, %c0_0, %c0_1] : memref<2x4x256xf32, #tpu.memory_space<vmem>>, vector<2x4x256xf32>
    %c0_2 = arith.constant 0 : index
    %c0_3 = arith.constant 0 : index
    %c0_4 = arith.constant 0 : index
    %1 = vector.load %arg3[%c0_2, %c0_3, %c0_4] : memref<2x4x256xf32, #tpu.memory_space<vmem>>, vector<2x4x256xf32>
    %c0_5 = arith.constant 0 : index
    %c0_6 = arith.constant 0 : index
    %c0_7 = arith.constant 0 : index
    %2 = vector.load %arg4[%c0_5, %c0_6, %c0_7] : memref<2x1x256xf32, #tpu.memory_space<vmem>>, vector<2x1x256xf32>
    %3 = arith.subf %0, %1 : vector<2x4x256xf32>
    %4 = arith.mulf %3, %3 : vector<2x4x256xf32>
    %5 = arith.mulf %2, %2 : vector<2x1x256xf32>
    %6 = vector.broadcast %5 : vector<2x1x256xf32> to vector<2x4x256xf32>
    %7 = arith.mulf %4, %6 : vector<2x4x256xf32>
    %cst = arith.constant dense<0.000000e+00> : vector<2x256xf32>
    %8 = vector.multi_reduction <add>, %7, %cst [1] : vector<2x4x256xf32> to vector<2x256xf32>
    %9 = vector.shape_cast %8 : vector<2x256xf32> to vector<2x1x256xf32>
    %cst_8 = arith.constant dense<0.000000e+00> : vector<1x256xf32>
    %10 = vector.multi_reduction <add>, %9, %cst_8 [0] : vector<2x1x256xf32> to vector<1x256xf32>
    %11 = vector.shape_cast %10 : vector<1x256xf32> to vector<1x1x256xf32>
    %12 = vector.extract_strided_slice %11 {offsets = [0, 0, 0], sizes = [1, 1, 128], strides = [1, 1, 1]} : vector<1x1x256xf32> to vector<1x1x128xf32>
    %13 = vector.extract_strided_slice %11 {offsets = [0, 0, 128], sizes = [1, 1, 128], strides = [1, 1, 1]} : vector<1x1x256xf32> to vector<1x1x128xf32>
    %14 = arith.addf %12, %13 : vector<1x1x128xf32>
    %15 = vector.shape_cast %14 : vector<1x1x128xf32> to vector<1x1x1x128xf32>
    %c0_9 = arith.constant 0 : index
    %c0_10 = arith.constant 0 : index
    %c0_11 = arith.constant 0 : index
    %c0_12 = arith.constant 0 : index
    %16 = vector.load %arg5[%c0_9, %c0_10, %c0_11, %c0_12] : memref<1x1x1x128xf32, #tpu.memory_space<vmem>>, vector<1x1x1x128xf32>
    tpu.vector_store %arg5[%c0_9, %c0_10, %c0_11, %c0_12], %15 {strides = array<i32>} : memref<1x1x1x128xf32, #tpu.memory_space<vmem>>, vector<1x1x1x128xf32>,
    return
  }
  func.func @transform_0(%arg0: i32, %arg1: i32) -> (i32, i32, i32) {
    %c0_i32 = arith.constant 0 : i32
    %c0_i32_0 = arith.constant 0 : i32
    return %arg0, %c0_i32, %arg1 : i32, i32, i32
  }
  func.func @transform_1(%arg0: i32, %arg1: i32) -> (i32, i32, i32) {
    %c0_i32 = arith.constant 0 : i32
    %c0_i32_0 = arith.constant 0 : i32
    return %arg0, %c0_i32, %arg1 : i32, i32, i32
  }
  func.func @transform_2(%arg0: i32, %arg1: i32) -> (i32, i32, i32) {
    %c0_i32 = arith.constant 0 : i32
    %c0_i32_0 = arith.constant 0 : i32
    return %arg0, %c0_i32, %arg1 : i32, i32, i32
  }
  func.func @transform_3(%arg0: i32, %arg1: i32) -> (i32, i32, i32, i32) {
    %c0_i32 = arith.constant 0 : i32
    %c0_i32_0 = arith.constant 0 : i32
    %c0_i32_1 = arith.constant 0 : i32
    return %arg0, %arg1, %c0_i32, %c0_i32_0 : i32, i32, i32, i32
  }
}

</mosaic_0001>

<llo_original>
// kernel: tpu_custom_call.1
$region0: #{tpu_custom_call.1}
  #allocation0 [shape = 'u32[]', space=smem, size = 0x4, offset = 0x4, fixed_abs, tag = 'smem constant byte address 0x4 - core index']
  #allocation1 [shape = 'u32[144,128]{1,0:T(1,128)}', space=vmem, size = 0x12000, scoped, tag = 'internal scratch']
  %s0 = inlined_call_operand.hbm [shape: f32[2,4,256], index: 0, kind: input, shape index: {}]
  %s1 = inlined_call_operand.hbm [shape: f32[2,4,256], index: 1, kind: input, shape index: {}]
  %s2 = inlined_call_operand.hbm [shape: f32[2,1,256], index: 2, kind: input, shape index: {}]
  %s3 = inlined_call_operand.hbm [shape: f32[1,1,1,128], index: 3, kind: output, shape index: {}]
  %s4 = sld [smem:[#allocation0]]
  $region34: #{tpu_custom_call.1} parent=0
    _
  %s6 = ssub.s32 1, %s4
  %s7 = scalar_select 0, %s6, %s4
  $region1: #{tpu_custom_call.1} parent=0
    #allocation2 [shape = 'u8[8192]{0}', space=vmem, size = 0x2000, scoped, tag = 'input window, operand 0, single buffered']
    #allocation3 [shape = 's32[1]{0}', space=sflag, size = 0x4, scoped, tag = 'scoped memory for tpu_custom_call.1']
    #allocation4 [shape = 's32[1]{0}', space=sflag, size = 0x4, scoped, tag = 'scoped memory for tpu_custom_call.1']
    #allocation5 [shape = 'u8[8192]{0}', space=vmem, size = 0x2000, scoped, tag = 'input window, operand 1, single buffered']
    #allocation6 [shape = 's32[1]{0}', space=sflag, size = 0x4, scoped, tag = 'scoped memory for tpu_custom_call.1']
    #allocation7 [shape = 'u8[2048]{0}', space=vmem, size = 0x800, scoped, tag = 'input window, operand 2, single buffered']
    #allocation8 [shape = 'u8[512]{0}', space=vmem, size = 0x400, scoped, tag = 'output window, operand 0, single buffered']
    %8 = vsyncpa [#allocation3], 0
    %9 = vsyncpa [#allocation6], 0
    %10 = vsyncpa [#allocation4], 0
    // Predicated region
    $region2: #{tpu_custom_call.1} parent=1 // pred_check
      _
    $region3: #{tpu_custom_call.1} parent=1 // pred_check_branch
      %12 = sbr.rel (0) target = $region5
    $region4: #{tpu_custom_call.1} parent=1 // pred_region
      %s14 = ssub.s32 256, 256
      %15 = vsyncadd [#allocation3], %s14
      %s16 = sshll.u32 [#allocation2], 4
      %s17 = int_to_ptr.vmem [resolvable:$true] %s16
      %22 = dma.hbm_to_vmem [thread:$0]  %s0, 256, %s17, [#allocation3], 128, 128, 8
    $region5: #{tpu_custom_call.1} parent=1 // pred_fallthru
      _
    // Predicated region
    $region6: #{tpu_custom_call.1} parent=1 // pred_check
      _
    $region7: #{tpu_custom_call.1} parent=1 // pred_check_branch
      %24 = sbr.rel (0) target = $region9
    $region8: #{tpu_custom_call.1} parent=1 // pred_region
      %s26 = ssub.s32 256, 256
      %27 = vsyncadd [#allocation6], %s26
      %s28 = sshll.u32 [#allocation5], 4
      %s29 = int_to_ptr.vmem [resolvable:$true] %s28
      %34 = dma.hbm_to_vmem [thread:$0]  %s1, 256, %s29, [#allocation6], 128, 128, 8
    $region9: #{tpu_custom_call.1} parent=1 // pred_fallthru
      _
    // Predicated region
    $region10: #{tpu_custom_call.1} parent=1 // pred_check
      _
    $region11: #{tpu_custom_call.1} parent=1 // pred_check_branch
      %36 = sbr.rel (0) target = $region13
    $region12: #{tpu_custom_call.1} parent=1 // pred_region
      %s38 = ssub.s32 64, 64
      %39 = vsyncadd [#allocation6], %s38
      %s40 = sshll.u32 [#allocation7], 4
      %s41 = int_to_ptr.vmem [resolvable:$true] %s40
      %46 = dma.hbm_to_vmem [thread:$0]  %s2, 64, %s41, [#allocation6], 32, 32, 2
    $region13: #{tpu_custom_call.1} parent=1 // pred_fallthru
      _
    // Predicated region
    $region14: #{tpu_custom_call.1} parent=1 // pred_check
      _
    $region15: #{tpu_custom_call.1} parent=1 // pred_check_branch
      %48 = sbr.rel (0) target = $region17
    $region16: #{tpu_custom_call.1} parent=1 // pred_region
      %49 = dma.done [#allocation3], 256
    $region17: #{tpu_custom_call.1} parent=1 // pred_fallthru
      _
    // Predicated region
    $region18: #{tpu_custom_call.1} parent=1 // pred_check
      _
    $region19: #{tpu_custom_call.1} parent=1 // pred_check_branch
      %51 = sbr.rel (0) target = $region21
    $region20: #{tpu_custom_call.1} parent=1 // pred_region
      %52 = dma.done [#allocation6], 256
    $region21: #{tpu_custom_call.1} parent=1 // pred_fallthru
      _
    // Predicated region
    $region22: #{tpu_custom_call.1} parent=1 // pred_check
      _
    $region23: #{tpu_custom_call.1} parent=1 // pred_check_branch
      %54 = sbr.rel (0) target = $region25
    $region24: #{tpu_custom_call.1} parent=1 // pred_region
      %55 = dma.done [#allocation6], 64
    $region25: #{tpu_custom_call.1} parent=1 // pred_fallthru
      _
    %v56 = vld [vmem:[#allocation2] sm:$0xff]
    %v57 = vld [vmem:[#allocation2 + $0x8] sm:$0xff]
    %v58 = vld [vmem:[#allocation5] sm:$0xff]
    %v59 = vld [vmem:[#allocation5 + $0x8] sm:$0xff]
    %v60 = vld [vmem:[#allocation7] sm:$0x3]
    %v61 = vld [vmem:[#allocation7 + $0x2] sm:$0x3]
    %v62 = vsub.f32 %v56, %v58
    %v63 = vsub.f32 %v57, %v59
    %v64 = vmul.f32 %v62, %v62
    %v65 = vmul.f32 %v63, %v63
    %v66 = vmul.f32 %v60, %v60
    %v67 = vmul.f32 %v61, %v61
    %v70 = vlaneseq
    %v71 = vshrl.u32 %v70, 7
    %v72 = vsub.s32 0, %v71
    %v73 = vrot.slane %v66, %v72
    %v74 = vlaneseq
    %v75 = vshrl.u32 %v74, 7
    %v76 = vsub.s32 1, %v75
    %v77 = vrot.slane %v66, %v76
    %v78 = vlaneseq
    %v79 = vshrl.u32 %v78, 7
    %v80 = vsub.s32 0, %v79
    %v81 = vrot.slane %v67, %v80
    %v82 = vlaneseq
    %v83 = vshrl.u32 %v82, 7
    %v84 = vsub.s32 1, %v83
    %v85 = vrot.slane %v67, %v84
    %v86 = vcombine.low %v73, %v77
    %v87 = vcombine.low %v81, %v85
    %v90 = vmul.f32 %v64, %v86
    %v91 = vmul.f32 %v65, %v87
    %v94 = vcombine.high %v90, %v90
    %v95 = vcombine.high %v91, %v91
    %vm98 = vcmask 1043456
    %v99 = vsel %vm98, %v90, 0.0
    %v100 = vrot.slane %v99, 4
    %v101 = vadd.f32 %v99, %v100
    %v102 = vrot.slane %v101, 2
    %v103 = vadd.f32 %v101, %v102
    %v104 = vrot.slane %v103, 1
    %v105 = vadd.f32 %v103, %v104
    %v106 = vsel %vm98, %v94, 0.0
    %v107 = vrot.slane %v106, 4
    %v108 = vadd.f32 %v106, %v107
    %v109 = vrot.slane %v108, 2
    %v110 = vadd.f32 %v108, %v109
    %v111 = vrot.slane %v110, 1
    %v112 = vadd.f32 %v110, %v111
    %v113 = vsel %vm98, %v91, 0.0
    %v114 = vrot.slane %v113, 4
    %v115 = vadd.f32 %v113, %v114
    %v116 = vrot.slane %v115, 2
    %v117 = vadd.f32 %v115, %v116
    %v118 = vrot.slane %v117, 1
    %v119 = vadd.f32 %v117, %v118
    %v120 = vsel %vm98, %v95, 0.0
    %v121 = vrot.slane %v120, 4
    %v122 = vadd.f32 %v120, %v121
    %v123 = vrot.slane %v122, 2
    %v124 = vadd.f32 %v122, %v123
    %v125 = vrot.slane %v124, 1
    %v126 = vadd.f32 %v124, %v125
    %v127 = vadd.f32 %v105, %v119
    %v128 = vadd.f32 %v112, %v126
    %v129 = vadd.f32 %v127, %v128
    %130 = vst [vmem:[#allocation8] sm:$0x1] %v129
    // Predicated region
    $region26: #{tpu_custom_call.1} parent=1 // pred_check
      _
    $region27: #{tpu_custom_call.1} parent=1 // pred_check_branch
      %132 = sbr.rel (0) target = $region29
    $region28: #{tpu_custom_call.1} parent=1 // pred_region
      %s134 = ssub.s32 16, 16
      %135 = vsyncadd [#allocation4], %s134
      %s137 = sshll.u32 [#allocation8], 4
      %s138 = int_to_ptr.vmem [resolvable:$true] %s137
      %140 = dma.vmem_to_hbm [thread:$0]  %s138, 16, %s3, [#allocation4]
    $region29: #{tpu_custom_call.1} parent=1 // pred_fallthru
      _
    // Predicated region
    $region30: #{tpu_custom_call.1} parent=1 // pred_check
      _
    $region31: #{tpu_custom_call.1} parent=1 // pred_check_branch
      %142 = sbr.rel (0) target = $region33
    $region32: #{tpu_custom_call.1} parent=1 // pred_region
      %143 = dma.done [#allocation4], 16
    $region33: #{tpu_custom_call.1} parent=1 // pred_fallthru
      _
    %144 = vsyncpa [#allocation3], 1
    %145 = vsyncpa [#allocation6], 1
    %146 = vsyncpa [#allocation4], 1

</llo_original>
